<compile_context>
chip_gen: v6e
topology: v6e:2x2x1
jax: 0.10.0
libtpu: 0.0.40
codegen_flags: <defaults>
</compile_context>

<pallas_src>
import functools

import numpy as np
import jax
import jax.numpy as jnp
from jax.experimental import pallas as pl
from jax.experimental.pallas import tpu as pltpu


def _causal_conv_kernel(x_ref, halo_ref, w_ref, o_ref, *, c_out, num_tiles, compute_dtype):
    """One (time-tile, batch) grid step.

    x_ref    : (TL, C_in)               current time tile, original dtype (channel-last)
    halo_ref : (N*num_tiles, C_out)     resident f32 halo contributions x[n, l*TL-1, :] @ W0^T
    w_ref    : (C_in, 2*C_out)          packed [W1^T | W0^T] in compute dtype
    o_ref    : (C_out, TL)              lane-dense output tile (PyTorch NCL layout)
    """
    l = pl.program_id(0)
    n = pl.program_id(1)

    x = x_ref[...].astype(compute_dtype)                         # cast in-kernel (no HBM pass)
    w = w_ref[...]

    # Single fused MXU matmul for both taps, f32 accumulation:
    #   columns [:c_out]  = x[t] @ W1^T   (current tap)
    #   columns [c_out:]  = x[t] @ W0^T   (belongs to output row t+1)
    uv = jnp.dot(x, w, preferred_element_type=jnp.float32)       # (TL, 2*C_out)

    cur = uv[:, :c_out]                                          # (TL, C_out)
    prev = pltpu.roll(uv[:, c_out:], shift=1, axis=0)            # row t <- x[t-1] @ W0^T (XLU)

    # Row 0 of the shifted product comes from the previous tile (or zeros for tile 0);
    # its contribution was precomputed in the wrapper and sits resident in VMEM.
    halo = halo_ref[pl.ds(n * num_tiles + l, 1), :]              # (1, C_out) f32
    row0 = jax.lax.broadcasted_iota(jnp.int32, prev.shape, 0) == 0
    prev = jnp.where(row0, halo, prev)

    y = cur + prev                                               # (TL, C_out) f32
    # Lane-dense store: transpose the small C_out-wide result (XLU has slack here).
    o_ref[...] = jnp.transpose(y, (1, 0)).astype(o_ref.dtype)    # (C_out, TL)


def causal_input_convolution(x, weight, *, tile_l=8192, use_bf16_matmul=True):
    """x: (N, L, C_in) in any real dtype (the module's `.float()` cast happens in-kernel).
    weight: (C_out, C_in, 2) PyTorch Conv1d weight.  Returns (N, C_out, L) float32.
    """
    N, L, C_in = x.shape
    C_out = weight.shape[0]

    # Time tile: whole L if it fits, else the largest multiple of 128 <= tile_l.
    if L <= tile_l:
        tl = L
        num_tiles = 1
    else:
        tl = max(128, (int(tile_l) // 128) * 128)
        num_tiles = int(pl.cdiv(L, tl))

    compute_dtype = jnp.bfloat16 if use_bf16_matmul else jnp.float32

    # Packed tap weights: y[t] = x[t] @ W1^T + x[t-1] @ W0^T.
    w = weight.astype(jnp.float32)
    w_packed = jnp.concatenate([w[:, :, 1].T, w[:, :, 0].T], axis=1).astype(compute_dtype)

    # Precomputed halo contribution per (n, tile): (x[n, l*tl - 1, :] @ W0^T), zeros for l == 0.
    # Only num_tiles-1 rows of x are touched (strided slice), and the result is C_out wide.
    if num_tiles > 1:
        halo_rows = x[:, tl - 1:(num_tiles - 1) * tl:tl, :].astype(jnp.float32)
        halo_contrib = jnp.einsum("nti,oi->nto", halo_rows, w[:, :, 0])
        halo_contrib = jnp.concatenate(
            [jnp.zeros((N, 1, C_out), jnp.float32), halo_contrib], axis=1)
    else:
        halo_contrib = jnp.zeros((N, 1, C_out), jnp.float32)
    halo_flat = halo_contrib.reshape(N * num_tiles, C_out)

    # VMEM budget from the actual tile (double-buffered x/out tiles, in-kernel cast copy,
    # uv/roll/transpose temporaries, resident halo, weights), capped at 48 MiB for v7x.
    x_item = jnp.dtype(x.dtype).itemsize
    est = (2 * tl * C_in * x_item                       # double-buffered x tiles
           + tl * C_in * jnp.dtype(compute_dtype).itemsize
           + 2 * tl * C_out * 4                         # double-buffered output tiles
           + 8 * tl * C_out * 4                         # uv / rolled / y / y^T temporaries
           + N * num_tiles * C_out * 4
           + C_in * 2 * C_out * 4)
    vmem_limit = int(min(max(int(1.5 * est), 16 << 20), 48 << 20))

    kernel = functools.partial(_causal_conv_kernel, c_out=C_out,
                               num_tiles=num_tiles, compute_dtype=compute_dtype)
    out = pl.pallas_call(
        kernel,
        out_shape=jax.ShapeDtypeStruct((N, C_out, L), jnp.float32),
        grid=(num_tiles, N),
        in_specs=[
            pl.BlockSpec((pl.Squeezed(), tl, C_in), lambda l, n: (n, l, 0)),
            pl.BlockSpec((N * num_tiles, C_out), lambda l, n: (0, 0)),   # resident halo
            pl.BlockSpec((C_in, 2 * C_out), lambda l, n: (0, 0)),        # resident weights
        ],
        out_specs=pl.BlockSpec((pl.Squeezed(), C_out, tl), lambda l, n: (n, 0, l)),
        compiler_params=pltpu.CompilerParams(
            dimension_semantics=("parallel", "parallel"),
            vmem_limit_bytes=vmem_limit),
    )(x, halo_flat, w_packed)
    return out


def _reference(x, weight):
    """Pure-JAX mirror of the PyTorch forward (NCL layout)."""
    x_ncl = jnp.transpose(x, (0, 2, 1)).astype(jnp.float32)
    y = jax.lax.conv_general_dilated(
        x_ncl, weight.astype(jnp.float32),
        window_strides=(1,), padding=[(1, 1)],
        dimension_numbers=("NCH", "OIH", "NCH"),
        precision=jax.lax.Precision.HIGHEST)
    return y[:, :, :-1]


if __name__ == "__main__":
    key = jax.random.PRNGKey(0)
    k_x, k_w = jax.random.split(key)

    # Module defaults: in_channels=256, hidden_channels=16.  L=448 with tile_l=128 gives
    # 4 time tiles per batch element with a ragged last block (448 = 3*128 + 64), exercising
    # both the cross-tile halo and the cdiv/masked-store path.
    N, L, C_in, C_out = 2, 448, 256, 16
    x = jax.random.normal(k_x, (N, L, C_in), jnp.float32)
    bound = 1.0 / np.sqrt(C_in * 2)
    weight = jax.random.uniform(k_w, (C_out, C_in, 2), jnp.float32, -bound, bound)

    ref = _reference(x, weight)

    # Multi-tile path (ragged last block + halos).  bf16 MXU operands -> loosened tolerance.
    out = jax.block_until_ready(causal_input_convolution(x, weight, tile_l=128))
    assert out.shape == (N, C_out, L)
    np.testing.assert_allclose(np.asarray(out), np.asarray(ref), rtol=2e-2, atol=2e-2)

    # Single-tile path (default tile_l covers all of L).
    out_single = jax.block_until_ready(causal_input_convolution(x, weight))
    np.testing.assert_allclose(np.asarray(out_single), np.asarray(ref), rtol=2e-2, atol=2e-2)

    # bf16 activations stream straight into the kernel (no wrapper f32 pre-cast / pad copy).
    x_bf16 = x.astype(jnp.bfloat16)
    ref_bf16 = _reference(x_bf16.astype(jnp.float32), weight)
    out_bf16 = jax.block_until_ready(causal_input_convolution(x_bf16, weight, tile_l=128))
    np.testing.assert_allclose(np.asarray(out_bf16), np.asarray(ref_bf16), rtol=2e-2, atol=2e-2)

    print("KERNEL_OK")
</pallas_src>

<mosaic_0001>
module attributes {stable_mosaic.version = 11 : i64} {
  func.func @_causal_conv_kernel(%arg0: i32, %arg1: i32, %arg2: memref<1x128x256xf32, #tpu.memory_space<vmem>>, %arg3: memref<8x16xf32, #tpu.memory_space<vmem>>, %arg4: memref<256x32xbf16, #tpu.memory_space<vmem>>, %arg5: memref<1x16x128xf32, #tpu.memory_space<vmem>>) attributes {dimension_semantics = [#tpu.dimension_semantics<parallel>, #tpu.dimension_semantics<parallel>], iteration_bounds = array<i64: 4, 2>, scalar_prefetch = 0 : i64, scratch_operands = 0 : i64, tpu.core_type = #tpu.core_type<tc>, window_params = [{transform_indices = @transform_0, window_bounds = array<i64: 1, 128, 256>}, {pipeline_mode = #tpu.pipeline_mode<synchronous>, transform_indices = @transform_1, window_bounds = array<i64: 8, 16>}, {pipeline_mode = #tpu.pipeline_mode<synchronous>, transform_indices = @transform_2, window_bounds = array<i64: 256, 32>}, {transform_indices = @transform_3, window_bounds = array<i64: 1, 16, 128>}]} {
    %c0 = arith.constant 0 : index
    %c0_0 = arith.constant 0 : index
    %c0_1 = arith.constant 0 : index
    %0 = vector.load %arg2[%c0, %c0_0, %c0_1] : memref<1x128x256xf32, #tpu.memory_space<vmem>>, vector<1x128x256xf32>
    %1 = vector.shape_cast %0 : vector<1x128x256xf32> to vector<128x256xf32>
    %2 = arith.truncf %1 : vector<128x256xf32> to vector<128x256xbf16>
    %c0_2 = arith.constant 0 : index
    %c0_3 = arith.constant 0 : index
    %3 = vector.load %arg4[%c0_2, %c0_3] : memref<256x32xbf16, #tpu.memory_space<vmem>>, vector<256x32xbf16>
    %cst = arith.constant dense<0.000000e+00> : vector<128x32xf32>
    %4 = tpu.matmul %2, %3, %cst {dimension_numbers = #tpu.dot_dimension_numbers<[1], [0], [0], [1], [0, 0, 1, 1], [], []>} : vector<128x256xbf16>, vector<256x32xbf16>, vector<128x32xf32> -> vector<128x32xf32>
    %5 = vector.extract_strided_slice %4 {offsets = [0, 0], sizes = [128, 16], strides = [1, 1]} : vector<128x32xf32> to vector<128x16xf32>
    %6 = vector.extract_strided_slice %4 {offsets = [0, 16], sizes = [128, 16], strides = [1, 1]} : vector<128x32xf32> to vector<128x16xf32>
    %c1_i32 = arith.constant 1 : i32
    %7 = tpu.dynamic_rotate %6 by %c1_i32 dim 0 : vector<128x16xf32>, i32 -> vector<128x16xf32>
    %c4_i32 = arith.constant 4 : i32
    %8 = arith.muli %arg1, %c4_i32 : i32
    %9 = arith.addi %8, %arg0 : i32
    %10 = arith.index_cast %9 : i32 to index
    %c0_4 = arith.constant 0 : index
    %11 = vector.load %arg3[%10, %c0_4] : memref<8x16xf32, #tpu.memory_space<vmem>>, vector<1x16xf32>
    %12 = tpu.iota {dimensions = array<i32: 0>} : vector<128x16xi32>
    %c0_i32 = arith.constant 0 : i32
    %13 = vector.broadcast %c0_i32 : i32 to vector<128x16xi32>
    %14 = arith.cmpi eq, %12, %13 : vector<128x16xi32>
    %15 = vector.shape_cast %11 : vector<1x16xf32> to vector<1x16xf32>
    %16 = vector.broadcast %15 : vector<1x16xf32> to vector<128x16xf32>
    %17 = arith.select %14, %16, %7 : vector<128x16xi1>, vector<128x16xf32>
    %18 = arith.addf %5, %17 : vector<128x16xf32>
    %19 = tpu.transpose %18, [1, 0] : vector<128x16xf32> -> vector<16x128xf32>
    %c0_5 = arith.constant 0 : index
    %c0_6 = arith.constant 0 : index
    %c0_7 = arith.constant 0 : index
    %20 = vector.load %arg5[%c0_5, %c0_6, %c0_7] : memref<1x16x128xf32, #tpu.memory_space<vmem>>, vector<1x16x128xf32>
    %21 = vector.shape_cast %20 : vector<1x16x128xf32> to vector<16x128xf32>
    %22 = vector.shape_cast %19 : vector<16x128xf32> to vector<1x16x128xf32>
    tpu.vector_store %arg5[%c0_5, %c0_6, %c0_7], %22 {strides = array<i32>} : memref<1x16x128xf32, #tpu.memory_space<vmem>>, vector<1x16x128xf32>,
    return
  }
  func.func @transform_0(%arg0: i32, %arg1: i32) -> (i32, i32, i32) {
    %c0_i32 = arith.constant 0 : i32
    %c0_i32_0 = arith.constant 0 : i32
    return %arg1, %arg0, %c0_i32 : i32, i32, i32
  }
  func.func @transform_1(%arg0: i32, %arg1: i32) -> (i32, i32) {
    %c0_i32 = arith.constant 0 : i32
    %c0_i32_0 = arith.constant 0 : i32
    %c0_i32_1 = arith.constant 0 : i32
    return %c0_i32, %c0_i32_0 : i32, i32
  }
  func.func @transform_2(%arg0: i32, %arg1: i32) -> (i32, i32) {
    %c0_i32 = arith.constant 0 : i32
    %c0_i32_0 = arith.constant 0 : i32
    %c0_i32_1 = arith.constant 0 : i32
    return %c0_i32, %c0_i32_0 : i32, i32
  }
  func.func @transform_3(%arg0: i32, %arg1: i32) -> (i32, i32, i32) {
    %c0_i32 = arith.constant 0 : i32
    %c0_i32_0 = arith.constant 0 : i32
    return %arg1, %c0_i32, %arg0 : i32, i32, i32
  }
}

</mosaic_0001>

<llo_original>
// kernel: tpu_custom_call.1
$region0: #{tpu_custom_call.1}
  #allocation0 [shape = 'u32[]', space=smem, size = 0x4, offset = 0x4, fixed_abs, tag = 'smem constant byte address 0x4 - core index']
  #allocation1 [shape = 'u32[144,128]{1,0:T(1,128)}', space=vmem, size = 0x12000, scoped, tag = 'internal scratch']
  %s0 = inlined_call_operand.hbm [shape: f32[2,448,256], index: 0, kind: input, shape index: {}]
  %s1 = inlined_call_operand.vmem [shape: f32[8,16], index: 1, kind: input, shape index: {}]
  %s2 = inlined_call_operand.vmem [shape: bf16[256,32], index: 2, kind: input, shape index: {}]
  %s3 = inlined_call_operand.hbm [shape: f32[2,16,448], index: 3, kind: output, shape index: {}]
  %s4 = sld [smem:[#allocation0]]
  $region49: #{tpu_custom_call.1} parent=0
    _
  %s6 = ssub.s32 1, %s4
  %s7 = scalar_select 0, %s6, %s4
  $region1: #{tpu_custom_call.1} parent=0
    #allocation2 [shape = 'u8[262144]{0}', space=vmem, size = 0x40000, scoped, tag = 'input window, operand 0']
    #allocation3 [shape = 's32[2]{0}', space=sflag, size = 0x8, scoped, tag = 'scoped memory for tpu_custom_call.1']
    #allocation4 [shape = 's32[2]{0}', space=sflag, size = 0x8, scoped, tag = 'scoped memory for tpu_custom_call.1']
    #allocation5 [shape = 'u8[16384]{0}', space=vmem, size = 0x4000, scoped, tag = 'output window, operand 0']
    %8 = vsyncpa [#allocation3], 0
    %s9 = scalar_lea.sflag [#allocation3], 1
    %10 = vsyncpa %s9, 0
    %11 = vsyncpa [#allocation4], 0
    %s12 = scalar_lea.sflag [#allocation4], 1
    %13 = vsyncpa %s12, 0
    loop: start=0, step=1, limit=10
    $region2: #{tpu_custom_call.1} parent=1 // loop_pre_header
      _
    $region3: #{tpu_custom_call.1} parent=1 // loop_header
      %s15 = sphi 0, %s19
      %p16 = scmp.ge.s32.totalorder %s15, 10
      %s22 = sphi 0, %s34
      %s23 = sphi 0, %s30
      %s24 = sphi 0, %s22
      %s25 = sphi 0, %s23
      %s26 = sphi 0, %s24
      %s27 = sphi 0, %s25
      %s39 = sphi 0, %s41
      %s42 = sphi 0, %s39
      %s43 = sphi 0, %s42
      %s59 = sphi 0, %s43
      %s63 = sphi 0, %s63
      %s65 = sphi 0, %s63
      %s66 = sphi 0, %s65
      %s80 = sphi 0, %s66
      %s84 = sphi 0, %s84
      %s86 = sphi 0, %s84
      %s87 = sphi 0, %s86
      %s101 = sphi 0, %s87
      %s109 = sphi 0, %s111
      %s112 = sphi 0, %s109
      %s113 = sphi 0, %s112
      %s129 = sphi 0, %s113
    $region4: #{tpu_custom_call.1} parent=1 // loop_header_branch
      %18 = sbr.rel (%p16) target = $region8
    $region5: #{tpu_custom_call.1} parent=1 // loop_body
      %s20 = ssub.s32 %s15, 1
      %s21 = ssub.s32 %s15, 2
      %s28 = sadd.s32 1, %s23
      %p29 = scmp.ge.s32.totalorder %s28, 2
      %s30 = scalar_select %p29, 0, %s28
      %s31 = sadd.s32 1, %s22
      %s32 = scalar_select %p29, %s31, %s22
      %p33 = scmp.ge.s32.totalorder %s32, 4
      %s34 = scalar_select %p33, 0, %s32
      %s35 = ssub.s32 %s23, %s30
      %s36 = ssub.s32 %s22, %s34
      %s37 = sor.u32 %s35, %s36
      %p38 = scmp.eq.s32.totalorder %s37, 0
      %s40 = sadd.s32 %s39, 1
      %s41 = scalar_select %p38, %s39, %s40
      %p44 = pneg %p38
      %p45 = scmp.eq.s32.totalorder %s15, 7
      %p46 = por %p44, %p45
      %p47 = scmp.ne.s32.totalorder %s39, %s42
      %p48 = scmp.eq.s32.totalorder %s15, 0
      %p49 = por %p47, %p48
      %p50 = scmp.ne.s32.totalorder %s39, %s42
      %p51 = scmp.eq.s32.totalorder %s20, 7
      %p52 = por %p50, %p51
      %p53 = scmp.ne.s32.totalorder %s42, %s43
      %p54 = scmp.eq.s32.totalorder %s20, 0
      %p55 = por %p53, %p54
      %p56 = scmp.ne.s32.totalorder %s42, %s43
      %p57 = scmp.eq.s32.totalorder %s21, 7
      %p58 = por %p56, %p57
      %p60 = scmp.ne.s32.totalorder %s43, %s59
      %p61 = scmp.eq.s32.totalorder %s21, 0
      %p62 = por %p60, %p61
      %s64 = sadd.s32 %s63, 1
      %p67 = scmp.eq.s32.totalorder %s15, 7
      %p68 = scmp.ne.s32.totalorder %s63, %s65
      %p69 = scmp.eq.s32.totalorder %s15, 0
      %p70 = por %p68, %p69
      %p71 = scmp.ne.s32.totalorder %s63, %s65
      %p72 = scmp.eq.s32.totalorder %s20, 7
      %p73 = por %p71, %p72
      %p74 = scmp.ne.s32.totalorder %s65, %s66
      %p75 = scmp.eq.s32.totalorder %s20, 0
      %p76 = por %p74, %p75
      %p77 = scmp.ne.s32.totalorder %s65, %s66
      %p78 = scmp.eq.s32.totalorder %s21, 7
      %p79 = por %p77, %p78
      %p81 = scmp.ne.s32.totalorder %s66, %s80
      %p82 = scmp.eq.s32.totalorder %s21, 0
      %p83 = por %p81, %p82
      %s85 = sadd.s32 %s84, 1
      %p88 = scmp.eq.s32.totalorder %s15, 7
      %p89 = scmp.ne.s32.totalorder %s84, %s86
      %p90 = scmp.eq.s32.totalorder %s15, 0
      %p91 = por %p89, %p90
      %p92 = scmp.ne.s32.totalorder %s84, %s86
      %p93 = scmp.eq.s32.totalorder %s20, 7
      %p94 = por %p92, %p93
      %p95 = scmp.ne.s32.totalorder %s86, %s87
      %p96 = scmp.eq.s32.totalorder %s20, 0
      %p97 = por %p95, %p96
      %p98 = scmp.ne.s32.totalorder %s86, %s87
      %p99 = scmp.eq.s32.totalorder %s21, 7
      %p100 = por %p98, %p99
      %p102 = scmp.ne.s32.totalorder %s87, %s101
      %p103 = scmp.eq.s32.totalorder %s21, 0
      %p104 = por %p102, %p103
      %s105 = ssub.s32 %s23, %s30
      %s106 = ssub.s32 %s22, %s34
      %s107 = sor.u32 %s105, %s106
      %p108 = scmp.eq.s32.totalorder %s107, 0
      %s110 = sadd.s32 %s109, 1
      %s111 = scalar_select %p108, %s109, %s110
      %p114 = pneg %p108
      %p115 = scmp.eq.s32.totalorder %s15, 7
      %p116 = por %p114, %p115
      %p117 = scmp.ne.s32.totalorder %s109, %s112
      %p118 = scmp.eq.s32.totalorder %s15, 0
      %p119 = por %p117, %p118
      %p120 = scmp.ne.s32.totalorder %s109, %s112
      %p121 = scmp.eq.s32.totalorder %s20, 7
      %p122 = por %p120, %p121
      %p123 = scmp.ne.s32.totalorder %s112, %s113
      %p124 = scmp.eq.s32.totalorder %s20, 0
      %p125 = por %p123, %p124
      %p126 = scmp.ne.s32.totalorder %s112, %s113
      %p127 = scmp.eq.s32.totalorder %s21, 7
      %p128 = por %p126, %p127
      %p130 = scmp.ne.s32.totalorder %s113, %s129
      %p131 = scmp.eq.s32.totalorder %s21, 0
      %p132 = por %p130, %p131
      %p133 = scmp.le.s32.totalorder 1, %s15
      %p134 = scmp.lt.s32.totalorder %s15, 9
      %p135 = pnand %p133, %p134
      %p136 = pneg %p135
      // Predicated region
      $region9: #{tpu_custom_call.1} parent=5 // pred_check
        _
      $region10: #{tpu_custom_call.1} parent=5 // pred_check_branch
        %138 = sbr.rel (%p135) target = $region12
      $region11: #{tpu_custom_call.1} parent=5 // pred_region
        %s139 = ssub.s32 %s15, 1
        // Predicated region
        $region13: #{tpu_custom_call.1} parent=11 // pred_check
          %p140 = pneg %p76
        $region14: #{tpu_custom_call.1} parent=11 // pred_check_branch
          %142 = sbr.rel (%p140) target = $region16
        $region15: #{tpu_custom_call.1} parent=11 // pred_region
          _
        $region16: #{tpu_custom_call.1} parent=11 // pred_fallthru
          _
        // Predicated region
        $region17: #{tpu_custom_call.1} parent=11 // pred_check
          %p143 = pneg %p97
        $region18: #{tpu_custom_call.1} parent=11 // pred_check_branch
          %145 = sbr.rel (%p143) target = $region20
        $region19: #{tpu_custom_call.1} parent=11 // pred_region
          _
        $region20: #{tpu_custom_call.1} parent=11 // pred_fallthru
          _
      $region12: #{tpu_custom_call.1} parent=5 // pred_fallthru
        _
      %p146 = scmp.lt.s32.totalorder %s15, 8
      // Predicated region
      $region21: #{tpu_custom_call.1} parent=5 // pred_check
        %p147 = pneg %p146
      $region22: #{tpu_custom_call.1} parent=5 // pred_check_branch
        %149 = sbr.rel (%p147) target = $region24
      $region23: #{tpu_custom_call.1} parent=5 // pred_region
        // Predicated region
        $region25: #{tpu_custom_call.1} parent=23 // pred_check
          %p150 = pneg %p49
        $region26: #{tpu_custom_call.1} parent=23 // pred_check_branch
          %152 = sbr.rel (%p150) target = $region28
        $region27: #{tpu_custom_call.1} parent=23 // pred_region
          %s153 = sand.u32 %s39, 1
          %s154 = scalar_lea.sflag [#allocation3], %s153
          %s155 = sand.u32 %s39, 1
          %s156 = smul.addr %s155, 256
          %s157 = scalar_lea.vmem [#allocation2], %s156
          %s158 = smul.u32 16, %s22
          %s159 = ssub.s32 56, %s158
          %p160 = scmp.lt.s32.totalorder %s159, 16
          %s161 = scalar_select %p160, %s159, 16
          %s162 = smul.u32 128, %s161
          %s163 = smul.u32 %s162, 2
          %s165 = ssub.s32 4096, %s163
          %166 = vsyncadd %s154, %s165
          %p167 = scmp.ne.s32.totalorder 0, %s163
          %s168 = smul.addr %s158, 2
          %s169 = smul.addr %s23, 112
          %s170 = sadd.s32 %s168, %s169
          %s171 = smul.addr %s170, 128
          %s172 = scalar_lea.hbm %s0, %s171
          %s173 = smul.u32 16, %s161
          %s174 = sshll.u32 %s157, 4
          %s175 = int_to_ptr.vmem [resolvable:$true] %s174
          %s176 = sshll.u32 %s173, 4
          %180 = dma.hbm_to_vmem [thread:$0]  (%p167), %s172, %s176, %s175, %s154, 256, 256, 16
        $region28: #{tpu_custom_call.1} parent=23 // pred_fallthru
          _
      $region24: #{tpu_custom_call.1} parent=5 // pred_fallthru
        _
      %p181 = scmp.le.s32.totalorder 1, %s15
      %p182 = scmp.lt.s32.totalorder %s15, 9
      %p183 = pnand %p181, %p182
      %p184 = pneg %p183
      // Predicated region
      $region29: #{tpu_custom_call.1} parent=5 // pred_check
        _
      $region30: #{tpu_custom_call.1} parent=5 // pred_check_branch
        %186 = sbr.rel (%p183) target = $region32
      $region31: #{tpu_custom_call.1} parent=5 // pred_region
        %s187 = ssub.s32 %s15, 1
        %s188 = sand.u32 %s42, 1
        %s189 = scalar_lea.sflag [#allocation3], %s188
        %s190 = sand.u32 %s42, 1
        %s191 = smul.addr %s190, 256
        %s192 = scalar_lea.vmem [#allocation2], %s191
        // Predicated region
        $region33: #{tpu_custom_call.1} parent=31 // pred_check
          %p193 = pneg %p55
        $region34: #{tpu_custom_call.1} parent=31 // pred_check_branch
          %195 = sbr.rel (%p193) target = $region36
        $region35: #{tpu_custom_call.1} parent=31 // pred_region
          %196 = dma.done %s189, 4096
        $region36: #{tpu_custom_call.1} parent=31 // pred_fallthru
          _
        %s197 = sand.u32 %s42, 1
        %s198 = scalar_lea.sflag [#allocation3], %s197
        %s199 = sand.u32 %s42, 1
        %s200 = smul.addr %s199, 256
        %s201 = scalar_lea.vmem [#allocation2], %s200
        %p202 = pneg %p55
        %p203 = pneg %p52
        %p204 = pneg %p76
        %p205 = pneg %p73
        %p206 = pneg %p97
        %p207 = pneg %p94
        %p208 = pneg %p125
        %p209 = pneg %p122
        %s210 = sand.u32 %s112, 1
        %s211 = scalar_lea.sflag [#allocation4], %s210
        %s212 = sand.u32 %s112, 1
        %s213 = smul.addr %s212, 16
        %s214 = scalar_lea.vmem [#allocation5], %s213
        %s215 = smul.u32 16, %s24
        %s216 = ssub.s32 56, %s215
        %p217 = scmp.lt.s32.totalorder %s216, 16
        %s218 = scalar_select %p217, %s216, 16
        %s219 = smul.u32 128, %s218
        %s220 = smul.u32 %s219, 2
        %v222 = vld [vmem:[%s192] sm:$0xff]
        %v223 = vld [vmem:[%s192 + $0x8] sm:$0xff]
        %v224 = vld [vmem:[%s192 + $0x10] sm:$0xff]
        %v225 = vld [vmem:[%s192 + $0x18] sm:$0xff]
        %v226 = vld [vmem:[%s192 + $0x20] sm:$0xff]
        %v227 = vld [vmem:[%s192 + $0x28] sm:$0xff]
        %v228 = vld [vmem:[%s192 + $0x30] sm:$0xff]
        %v229 = vld [vmem:[%s192 + $0x38] sm:$0xff]
        %v230 = vld [vmem:[%s192 + $0x40] sm:$0xff]
        %v231 = vld [vmem:[%s192 + $0x48] sm:$0xff]
        %v232 = vld [vmem:[%s192 + $0x50] sm:$0xff]
        %v233 = vld [vmem:[%s192 + $0x58] sm:$0xff]
        %v234 = vld [vmem:[%s192 + $0x60] sm:$0xff]
        %v235 = vld [vmem:[%s192 + $0x68] sm:$0xff]
        %v236 = vld [vmem:[%s192 + $0x70] sm:$0xff]
        %v237 = vld [vmem:[%s192 + $0x78] sm:$0xff]
        %v238 = vld [vmem:[%s192 + $0x80] sm:$0xff]
        %v239 = vld [vmem:[%s192 + $0x88] sm:$0xff]
        %v240 = vld [vmem:[%s192 + $0x90] sm:$0xff]
        %v241 = vld [vmem:[%s192 + $0x98] sm:$0xff]
        %v242 = vld [vmem:[%s192 + $0xa0] sm:$0xff]
        %v243 = vld [vmem:[%s192 + $0xa8] sm:$0xff]
        %v244 = vld [vmem:[%s192 + $0xb0] sm:$0xff]
        %v245 = vld [vmem:[%s192 + $0xb8] sm:$0xff]
        %v246 = vld [vmem:[%s192 + $0xc0] sm:$0xff]
        %v247 = vld [vmem:[%s192 + $0xc8] sm:$0xff]
        %v248 = vld [vmem:[%s192 + $0xd0] sm:$0xff]
        %v249 = vld [vmem:[%s192 + $0xd8] sm:$0xff]
        %v250 = vld [vmem:[%s192 + $0xe0] sm:$0xff]
        %v251 = vld [vmem:[%s192 + $0xe8] sm:$0xff]
        %v252 = vld [vmem:[%s192 + $0xf0] sm:$0xff]
        %v253 = vld [vmem:[%s192 + $0xf8] sm:$0xff]
        %v254 = vpack.c.bf16 %v224, %v222
        %v255 = vpack.c.bf16 %v225, %v223
        %v256 = vpack.c.bf16 %v228, %v226
        %v257 = vpack.c.bf16 %v229, %v227
        %v258 = vpack.c.bf16 %v232, %v230
        %v259 = vpack.c.bf16 %v233, %v231
        %v260 = vpack.c.bf16 %v236, %v234
        %v261 = vpack.c.bf16 %v237, %v235
        %v262 = vpack.c.bf16 %v240, %v238
        %v263 = vpack.c.bf16 %v241, %v239
        %v264 = vpack.c.bf16 %v244, %v242
        %v265 = vpack.c.bf16 %v245, %v243
        %v266 = vpack.c.bf16 %v248, %v246
        %v267 = vpack.c.bf16 %v249, %v247
        %v268 = vpack.c.bf16 %v252, %v250
        %v269 = vpack.c.bf16 %v253, %v251
        %v270 = vld [vmem:[%s2] sm:$0xf]
        %v271 = vld [vmem:[%s2 + $0x4] sm:$0xf]
        %v272 = vld [vmem:[%s2 + $0x8] sm:$0xf]
        %v273 = vld [vmem:[%s2 + $0xc] sm:$0xf]
        %v274 = vld [vmem:[%s2 + $0x10] sm:$0xf]
        %v275 = vld [vmem:[%s2 + $0x14] sm:$0xf]
        %v276 = vld [vmem:[%s2 + $0x18] sm:$0xf]
        %v277 = vld [vmem:[%s2 + $0x1c] sm:$0xf]
        %v278 = vld [vmem:[%s2 + $0x20] sm:$0xf]
        %v279 = vld [vmem:[%s2 + $0x24] sm:$0xf]
        %v280 = vld [vmem:[%s2 + $0x28] sm:$0xf]
        %v281 = vld [vmem:[%s2 + $0x2c] sm:$0xf]
        %v282 = vld [vmem:[%s2 + $0x30] sm:$0xf]
        %v283 = vld [vmem:[%s2 + $0x34] sm:$0xf]
        %v284 = vld [vmem:[%s2 + $0x38] sm:$0xf]
        %v285 = vld [vmem:[%s2 + $0x3c] sm:$0xf]
        %v286 = vld [vmem:[%s2 + $0x40] sm:$0xf]
        %v287 = vld [vmem:[%s2 + $0x44] sm:$0xf]
        %v288 = vld [vmem:[%s2 + $0x48] sm:$0xf]
        %v289 = vld [vmem:[%s2 + $0x4c] sm:$0xf]
        %v290 = vld [vmem:[%s2 + $0x50] sm:$0xf]
        %v291 = vld [vmem:[%s2 + $0x54] sm:$0xf]
        %v292 = vld [vmem:[%s2 + $0x58] sm:$0xf]
        %v293 = vld [vmem:[%s2 + $0x5c] sm:$0xf]
        %v294 = vld [vmem:[%s2 + $0x60] sm:$0xf]
        %v295 = vld [vmem:[%s2 + $0x64] sm:$0xf]
        %v296 = vld [vmem:[%s2 + $0x68] sm:$0xf]
        %v297 = vld [vmem:[%s2 + $0x6c] sm:$0xf]
        %v298 = vld [vmem:[%s2 + $0x70] sm:$0xf]
        %v299 = vld [vmem:[%s2 + $0x74] sm:$0xf]
        %v300 = vld [vmem:[%s2 + $0x78] sm:$0xf]
        %v301 = vld [vmem:[%s2 + $0x7c] sm:$0xf]
        %v334 = vunpack.c.l.b16 %v270
        %v335 = vunpack.c.l.b16 %v271
        %v336 = vunpack.c.l.b16 %v272
        %v337 = vunpack.c.l.b16 %v273
        %v338 = vunpack.c.l.b16 %v274
        %v339 = vunpack.c.l.b16 %v275
        %v340 = vunpack.c.l.b16 %v276
        %v341 = vunpack.c.l.b16 %v277
        %v342 = vunpack.c.l.b16 %v278
        %v343 = vunpack.c.l.b16 %v279
        %v344 = vunpack.c.l.b16 %v280
        %v345 = vunpack.c.l.b16 %v281
        %v346 = vunpack.c.l.b16 %v282
        %v347 = vunpack.c.l.b16 %v283
        %v348 = vunpack.c.l.b16 %v284
        %v349 = vunpack.c.l.b16 %v285
        %v350 = vunpack.c.l.b16 %v286
        %v351 = vunpack.c.l.b16 %v287
        %v352 = vunpack.c.l.b16 %v288
        %v353 = vunpack.c.l.b16 %v289
        %v354 = vunpack.c.l.b16 %v290
        %v355 = vunpack.c.l.b16 %v291
        %v356 = vunpack.c.l.b16 %v292
        %v357 = vunpack.c.l.b16 %v293
        %v358 = vunpack.c.l.b16 %v294
        %v359 = vunpack.c.l.b16 %v295
        %v360 = vunpack.c.l.b16 %v296
        %v361 = vunpack.c.l.b16 %v297
        %v362 = vunpack.c.l.b16 %v298
        %v363 = vunpack.c.l.b16 %v299
        %v364 = vunpack.c.l.b16 %v300
        %v365 = vunpack.c.l.b16 %v301
        %v366 = vpack.c.b16 %v335, %v334
        %v367 = vpack.c.b16 %v337, %v336
        %v368 = vpack.c.b16 %v339, %v338
        %v369 = vpack.c.b16 %v341, %v340
        %v370 = vpack.c.b16 %v343, %v342
        %v371 = vpack.c.b16 %v345, %v344
        %v372 = vpack.c.b16 %v347, %v346
        %v373 = vpack.c.b16 %v349, %v348
        %v374 = vpack.c.b16 %v351, %v350
        %v375 = vpack.c.b16 %v353, %v352
        %v376 = vpack.c.b16 %v355, %v354
        %v377 = vpack.c.b16 %v357, %v356
        %v378 = vpack.c.b16 %v359, %v358
        %v379 = vpack.c.b16 %v361, %v360
        %v380 = vpack.c.b16 %v363, %v362
        %v381 = vpack.c.b16 %v365, %v364
        %398 = vmatprep.subr.bf16.mxu0 0
        %399 = vmatpush1.bf16.msra.mxu0 %v373
        %400 = vmatprep.subr.bf16.mxu0 0
        %401 = vmatpush1.bf16.msra.mxu0 %v372
        %402 = vmatprep.subr.bf16.mxu0 0
        %403 = vmatpush1.bf16.msra.mxu0 %v371
        %404 = vmatprep.subr.bf16.mxu0 0
        %405 = vmatpush1.bf16.msra.mxu0 %v370
        %406 = vmatprep.subr.bf16.mxu0 0
        %407 = vmatpush1.bf16.msra.mxu0 %v369
        %408 = vmatprep.subr.bf16.mxu0 0
        %409 = vmatpush1.bf16.msra.mxu0 %v368
        %410 = vmatprep.subr.bf16.mxu0 0
        %411 = vmatpush1.bf16.msra.mxu0 %v367
        %412 = vmatprep.subr.bf16.mxu0 0
        %413 = vmatpush1.bf16.msra.mxu0 %v366
        %414 = vmatprep.subr.bf16.mxu0 0
        %415 = vmatpush2.bf16.msra.mxu0 %v381
        %416 = vmatprep.subr.bf16.mxu0 0
        %417 = vmatpush2.bf16.msra.mxu0 %v380
        %418 = vmatprep.subr.bf16.mxu0 0
        %419 = vmatpush2.bf16.msra.mxu0 %v379
        %420 = vmatprep.subr.bf16.mxu0 0
        %421 = vmatpush2.bf16.msra.mxu0 %v378
        %422 = vmatprep.subr.bf16.mxu0 0
        %423 = vmatpush2.bf16.msra.mxu0 %v377
        %424 = vmatprep.subr.bf16.mxu0 0
        %425 = vmatpush2.bf16.msra.mxu0 %v376
        %426 = vmatprep.subr.bf16.mxu0 0
        %427 = vmatpush2.bf16.msra.mxu0 %v375
        %428 = vmatprep.subr.bf16.mxu0 0
        %429 = vmatpush2.bf16.msra.mxu0 %v374
        %430 = vmatprep.mubr.bf16.mxu0 %v255
        %431 = vmatmul.mubr.bf16.gmra.mxu0 %v254
        %v432 = vpop.f32.mrf.mxu0
        %v433 = vadd.f32 0.0, %v432
        %v434 = vpop.f32.mrf.mxu0
        %v435 = vpop.f32.mrf.mxu0
        %v436 = vadd.f32 0.0, %v435
        %v437 = vpop.f32.mrf.mxu0
        %438 = vmatprep.mubr.bf16.mxu0 %v257
        %439 = vmatmul.mubr.bf16.gmra.mxu0 %v256
        %v440 = vpop.f32.mrf.mxu0
        %v441 = vadd.f32 0.0, %v440
        %v442 = vpop.f32.mrf.mxu0
        %v443 = vpop.f32.mrf.mxu0
        %v444 = vadd.f32 0.0, %v443
        %v445 = vpop.f32.mrf.mxu0
        %446 = vmatprep.mubr.bf16.mxu0 %v259
        %447 = vmatmul.mubr.bf16.gmra.mxu0 %v258
        %v448 = vpop.f32.mrf.mxu0
        %v449 = vadd.f32 0.0, %v448
        %v450 = vpop.f32.mrf.mxu0
        %v451 = vpop.f32.mrf.mxu0
        %v452 = vadd.f32 0.0, %v451
        %v453 = vpop.f32.mrf.mxu0
        %454 = vmatprep.mubr.bf16.mxu0 %v261
        %455 = vmatmul.mubr.bf16.gmra.mxu0 %v260
        %v456 = vpop.f32.mrf.mxu0
        %v457 = vadd.f32 0.0, %v456
        %v458 = vpop.f32.mrf.mxu0
        %v459 = vpop.f32.mrf.mxu0
        %v460 = vadd.f32 0.0, %v459
        %v461 = vpop.f32.mrf.mxu0
        %462 = vmatprep.mubr.bf16.mxu0 %v263
        %463 = vmatmul.mubr.bf16.gmra.mxu0 %v262
        %v464 = vpop.f32.mrf.mxu0
        %v465 = vadd.f32 0.0, %v464
        %v466 = vpop.f32.mrf.mxu0
        %v467 = vpop.f32.mrf.mxu0
        %v468 = vadd.f32 0.0, %v467
        %v469 = vpop.f32.mrf.mxu0
        %470 = vmatprep.mubr.bf16.mxu0 %v265
        %471 = vmatmul.mubr.bf16.gmra.mxu0 %v264
        %v472 = vpop.f32.mrf.mxu0
        %v473 = vadd.f32 0.0, %v472
        %v474 = vpop.f32.mrf.mxu0
        %v475 = vpop.f32.mrf.mxu0
        %v476 = vadd.f32 0.0, %v475
        %v477 = vpop.f32.mrf.mxu0
        %478 = vmatprep.mubr.bf16.mxu0 %v267
        %479 = vmatmul.mubr.bf16.gmra.mxu0 %v266
        %v480 = vpop.f32.mrf.mxu0
        %v481 = vadd.f32 0.0, %v480
        %v482 = vpop.f32.mrf.mxu0
        %v483 = vpop.f32.mrf.mxu0
        %v484 = vadd.f32 0.0, %v483
        %v485 = vpop.f32.mrf.mxu0
        %486 = vmatprep.mubr.bf16.mxu0 %v269
        %487 = vmatmul.mubr.bf16.gmra.mxu0 %v268
        %v488 = vpop.f32.mrf.mxu0
        %v489 = vadd.f32 0.0, %v488
        %v490 = vpop.f32.mrf.mxu0
        %v491 = vpop.f32.mrf.mxu0
        %v492 = vadd.f32 0.0, %v491
        %v493 = vpop.f32.mrf.mxu0
        %494 = vdwg.mxu0
        %511 = vrot.lane.b32.xlu0 %v433, 112
        %v512 = vpop.permute.xlu0 %511
        %513 = vrot.lane.b32.xlu0 %v436, 112
        %v514 = vpop.permute.xlu0 %513
        %515 = vrot.lane.b32.xlu0 %v441, 112
        %v516 = vpop.permute.xlu0 %515
        %517 = vrot.lane.b32.xlu0 %v444, 112
        %v518 = vpop.permute.xlu0 %517
        %519 = vrot.lane.b32.xlu0 %v449, 112
        %v520 = vpop.permute.xlu0 %519
        %521 = vrot.lane.b32.xlu0 %v452, 112
        %v522 = vpop.permute.xlu0 %521
        %523 = vrot.lane.b32.xlu0 %v457, 112
        %v524 = vpop.permute.xlu0 %523
        %525 = vrot.lane.b32.xlu0 %v460, 112
        %v526 = vpop.permute.xlu0 %525
        %527 = vrot.lane.b32.xlu0 %v465, 112
        %v528 = vpop.permute.xlu0 %527
        %529 = vrot.lane.b32.xlu0 %v468, 112
        %v530 = vpop.permute.xlu0 %529
        %531 = vrot.lane.b32.xlu0 %v473, 112
        %v532 = vpop.permute.xlu0 %531
        %533 = vrot.lane.b32.xlu0 %v476, 112
        %v534 = vpop.permute.xlu0 %533
        %535 = vrot.lane.b32.xlu0 %v481, 112
        %v536 = vpop.permute.xlu0 %535
        %537 = vrot.lane.b32.xlu0 %v484, 112
        %v538 = vpop.permute.xlu0 %537
        %539 = vrot.lane.b32.xlu0 %v489, 112
        %v540 = vpop.permute.xlu0 %539
        %541 = vrot.lane.b32.xlu0 %v492, 112
        %v542 = vpop.permute.xlu0 %541
        %v559 = vrot.slane %v512, 7
        %v560 = vrot.slane %v514, 7
        %v561 = vrot.slane %v516, 7
        %v562 = vrot.slane %v518, 7
        %v563 = vrot.slane %v520, 7
        %v564 = vrot.slane %v522, 7
        %v565 = vrot.slane %v524, 7
        %v566 = vrot.slane %v526, 7
        %v567 = vrot.slane %v528, 7
        %v568 = vrot.slane %v530, 7
        %v569 = vrot.slane %v532, 7
        %v570 = vrot.slane %v534, 7
        %v571 = vrot.slane %v536, 7
        %v572 = vrot.slane %v538, 7
        %v573 = vrot.slane %v540, 7
        %v574 = vrot.slane %v542, 7
        %v575 = vlaneseq
        %v576 = vshrl.u32 %v575, 7
        %vm577 = vcmp.lt.s32.totalorder %v576, 1
        %v578 = vsel %vm577, %v573, %v574
        %v579 = vsel %vm577, %v572, %v573
        %v580 = vsel %vm577, %v571, %v572
        %v581 = vsel %vm577, %v570, %v571
        %v582 = vsel %vm577, %v569, %v570
        %v583 = vsel %vm577, %v568, %v569
        %v584 = vsel %vm577, %v567, %v568
        %v585 = vsel %vm577, %v566, %v567
        %v586 = vsel %vm577, %v565, %v566
        %v587 = vsel %vm577, %v564, %v565
        %v588 = vsel %vm577, %v563, %v564
        %v589 = vsel %vm577, %v562, %v563
        %v590 = vsel %vm577, %v561, %v562
        %v591 = vsel %vm577, %v560, %v561
        %v592 = vsel %vm577, %v559, %v560
        %v593 = vsel %vm577, %v574, %v559
        %s594 = smul.u32 %s25, 4
        %s595 = sadd.s32 %s594, %s24
        %s596 = scalar_lea.vmem %s1, %s595
        %v597 = vld [vmem:[%s596] sm:$0x1]
        %v598 = vadd.s32 %v576, 8
        %v599 = vadd.s32 %v576, 16
        %v600 = vadd.s32 %v576, 24
        %v601 = vadd.s32 %v576, 32
        %v602 = vadd.s32 %v576, 40
        %v603 = vadd.s32 %v576, 48
        %v604 = vadd.s32 %v576, 56
        %v605 = vadd.s32 %v576, 64
        %v606 = vadd.s32 %v576, 72
        %v607 = vadd.s32 %v576, 80
        %v608 = vadd.s32 %v576, 88
        %v609 = vadd.s32 %v576, 96
        %v610 = vadd.s32 %v576, 104
        %v611 = vadd.s32 %v576, 112
        %v612 = vadd.s32 %v576, 120
        %vm613 = vcmp.eq.s32.totalorder %v576, 0
        %vm614 = vcmp.eq.s32.totalorder %v598, 0
        %vm615 = vcmp.eq.s32.totalorder %v599, 0
        %vm616 = vcmp.eq.s32.totalorder %v600, 0
        %vm617 = vcmp.eq.s32.totalorder %v601, 0
        %vm618 = vcmp.eq.s32.totalorder %v602, 0
        %vm619 = vcmp.eq.s32.totalorder %v603, 0
        %vm620 = vcmp.eq.s32.totalorder %v604, 0
        %vm621 = vcmp.eq.s32.totalorder %v605, 0
        %vm622 = vcmp.eq.s32.totalorder %v606, 0
        %vm623 = vcmp.eq.s32.totalorder %v607, 0
        %vm624 = vcmp.eq.s32.totalorder %v608, 0
        %vm625 = vcmp.eq.s32.totalorder %v609, 0
        %vm626 = vcmp.eq.s32.totalorder %v610, 0
        %vm627 = vcmp.eq.s32.totalorder %v611, 0
        %vm628 = vcmp.eq.s32.totalorder %v612, 0
        %v629 = vlaneseq
        %v630 = vshrl.u32 %v629, 7
        %v631 = vsub.s32 0, %v630
        %v632 = vrot.slane %v597, %v631
        %v633 = vsel %vm613, %v632, %v593
        %v634 = vsel %vm614, %v632, %v592
        %v635 = vsel %vm615, %v632, %v591
        %v636 = vsel %vm616, %v632, %v590
        %v637 = vsel %vm617, %v632, %v589
        %v638 = vsel %vm618, %v632, %v588
        %v639 = vsel %vm619, %v632, %v587
        %v640 = vsel %vm620, %v632, %v586
        %v641 = vsel %vm621, %v632, %v585
        %v642 = vsel %vm622, %v632, %v584
        %v643 = vsel %vm623, %v632, %v583
        %v644 = vsel %vm624, %v632, %v582
        %v645 = vsel %vm625, %v632, %v581
        %v646 = vsel %vm626, %v632, %v580
        %v647 = vsel %vm627, %v632, %v579
        %v648 = vsel %vm628, %v632, %v578
        %v649 = vadd.f32 %v433, %v633
        %v650 = vadd.f32 %v436, %v634
        %v651 = vadd.f32 %v441, %v635
        %v652 = vadd.f32 %v444, %v636
        %v653 = vadd.f32 %v449, %v637
        %v654 = vadd.f32 %v452, %v638
        %v655 = vadd.f32 %v457, %v639
        %v656 = vadd.f32 %v460, %v640
        %v657 = vadd.f32 %v465, %v641
        %v658 = vadd.f32 %v468, %v642
        %v659 = vadd.f32 %v473, %v643
        %v660 = vadd.f32 %v476, %v644
        %v661 = vadd.f32 %v481, %v645
        %v662 = vadd.f32 %v484, %v646
        %v663 = vadd.f32 %v489, %v647
        %v664 = vadd.f32 %v492, %v648
        %665 = vxpose.xlu0.b32.start [1/16] %v649, 128
        %666 = vxpose.xlu0.b32.cont [2/16] %v650, 128
        %667 = vxpose.xlu0.b32.cont [3/16] %v651, 128
        %668 = vxpose.xlu0.b32.cont [4/16] %v652, 128
        %669 = vxpose.xlu0.b32.cont [5/16] %v653, 128
        %670 = vxpose.xlu0.b32.cont [6/16] %v654, 128
        %671 = vxpose.xlu0.b32.cont [7/16] %v655, 128
        %672 = vxpose.xlu0.b32.cont [8/16] %v656, 128
        %673 = vxpose.xlu0.b32.cont [9/16] %v657, 128
        %674 = vxpose.xlu0.b32.cont [10/16] %v658, 128
        %675 = vxpose.xlu0.b32.cont [11/16] %v659, 128
        %676 = vxpose.xlu0.b32.cont [12/16] %v660, 128
        %677 = vxpose.xlu0.b32.cont [13/16] %v661, 128
        %678 = vxpose.xlu0.b32.cont [14/16] %v662, 128
        %679 = vxpose.xlu0.b32.cont [15/16] %v663, 128
        %680 = vxpose.xlu0.b32.end [16/16] %v664, 128
        %v681 = vpop.trf.xlu0
        %v682 = vpop.trf.xlu0
        %v683 = vpop.trf.xlu0
        %v684 = vpop.trf.xlu0
        %v685 = vpop.trf.xlu0
        %v686 = vpop.trf.xlu0
        %v687 = vpop.trf.xlu0
        %v688 = vpop.trf.xlu0
        %v689 = vpop.trf.xlu0
        %v690 = vpop.trf.xlu0
        %v691 = vpop.trf.xlu0
        %v692 = vpop.trf.xlu0
        %v693 = vpop.trf.xlu0
        %v694 = vpop.trf.xlu0
        %v695 = vpop.trf.xlu0
        %v696 = vpop.trf.xlu0
        %697 = vst [vmem:[%s214] sm:$0xff] %v681
        %698 = vst [vmem:[%s214 + $0x8] sm:$0xff] %v682
        %s699 = sand.u32 %s112, 1
        %s700 = scalar_lea.sflag [#allocation4], %s699
        %s701 = sand.u32 %s112, 1
        %s702 = smul.addr %s701, 16
        %s703 = scalar_lea.vmem [#allocation5], %s702
        // Predicated region
        $region37: #{tpu_custom_call.1} parent=31 // pred_check
          %p704 = pneg %p122
        $region38: #{tpu_custom_call.1} parent=31 // pred_check_branch
          %706 = sbr.rel (%p704) target = $region40
        $region39: #{tpu_custom_call.1} parent=31 // pred_region
          %s708 = ssub.s32 256, 256
          %709 = vsyncadd %s700, %s708
          %s710 = smul.addr %s25, 8
          %s711 = sadd.s32 %s24, %s710
          %s712 = smul.addr %s711, 128
          %s713 = scalar_lea.hbm %s3, %s712
          %s714 = sshll.u32 %s703, 4
          %s715 = int_to_ptr.vmem [resolvable:$true] %s714
          %720 = dma.vmem_to_hbm [thread:$0]  %s715, 256, %s713, %s700, 128, 512, 8
        $region40: #{tpu_custom_call.1} parent=31 // pred_fallthru
          _
      $region32: #{tpu_custom_call.1} parent=5 // pred_fallthru
        _
      %p721 = scmp.le.s32.totalorder 2, %s15
      // Predicated region
      $region41: #{tpu_custom_call.1} parent=5 // pred_check
        %p722 = pneg %p721
      $region42: #{tpu_custom_call.1} parent=5 // pred_check_branch
        %724 = sbr.rel (%p722) target = $region44
      $region43: #{tpu_custom_call.1} parent=5 // pred_region
        %s725 = ssub.s32 %s15, 2
        // Predicated region
        $region45: #{tpu_custom_call.1} parent=43 // pred_check
          %p726 = pneg %p128
        $region46: #{tpu_custom_call.1} parent=43 // pred_check_branch
          %728 = sbr.rel (%p726) target = $region48
        $region47: #{tpu_custom_call.1} parent=43 // pred_region
          %s729 = sand.u32 %s113, 1
          %s730 = scalar_lea.sflag [#allocation4], %s729
          %s731 = sand.u32 %s113, 1
          %s732 = smul.addr %s731, 16
          %s733 = scalar_lea.vmem [#allocation5], %s732
          %734 = dma.done %s730, 256
        $region48: #{tpu_custom_call.1} parent=43 // pred_fallthru
          _
      $region44: #{tpu_custom_call.1} parent=5 // pred_fallthru
        _
    $region6: #{tpu_custom_call.1} parent=1 // loop_footer
      %s19 = sadd.s32 1, %s15
    $region7: #{tpu_custom_call.1} parent=1 // loop_footer_branch
      %14 = sbr.rel target = $region3
    $region8: #{tpu_custom_call.1} parent=1 // loop_exit
      _
    %735 = vsyncpa [#allocation3], 1
    %s736 = scalar_lea.sflag [#allocation3], 1
    %737 = vsyncpa %s736, 1
    %738 = vsyncpa [#allocation4], 1
    %s739 = scalar_lea.sflag [#allocation4], 1
    %740 = vsyncpa %s739, 1

</llo_original>
